<compile_context>
chip_gen: v7x
topology: tpu7x:2x2x1
jax: 0.10.0
libtpu: 0.0.40
codegen_flags: <defaults>
</compile_context>

<pallas_src>
import functools

import jax
import jax.numpy as jnp
from jax import lax
from jax.experimental import pallas as pl
from jax.experimental.pallas import tpu as pltpu


def spatial_discounting_mask(mask_width, mask_height, discounting_gamma=0.9, discounting=1):
    """JAX port of the numpy mask constructor.

    Returns a (mask_width, mask_height) float32 array; when multiplied against
    an (N, C, H, W) tensor, mask_width maps to H and mask_height to W, exactly
    matching the PyTorch (1, 1, mask_width, mask_height) broadcast.
    """
    gamma = discounting_gamma
    if not discounting:
        return jnp.ones((mask_width, mask_height), dtype=jnp.float32)
    i = jnp.arange(mask_width, dtype=jnp.float32)
    j = jnp.arange(mask_height, dtype=jnp.float32)
    vi = gamma ** jnp.minimum(i, mask_width - i)
    vj = gamma ** jnp.minimum(j, mask_height - j)
    return jnp.maximum(vi[:, None], vj[None, :]).astype(jnp.float32)


def _round_up(a, b):
    return (a + b - 1) // b * b


def _cdiv(a, b):
    return (a + b - 1) // b


# --------------------------------------------------------------------------
# Fused single-step kernel: whole problem in VMEM, scalar mean produced
# in-kernel (no trailing XLA reduce).  Used only when everything fits one tile.
# --------------------------------------------------------------------------
def _discounted_l1_fused_kernel(x_ref, y_ref, m_ref, out_ref, *, inv_count):
    x = x_ref[...].astype(jnp.float32)           # (R, HW)
    y = y_ref[...].astype(jnp.float32)
    m = m_ref[...]                               # (1, HW) f32, sublane broadcast
    w = jnp.abs(x * m - y * m)                   # same math as the PyTorch forward
    row_sum = jnp.sum(w, axis=1, keepdims=True)  # (R, 1)  lane reduce
    out_ref[...] = jnp.sum(row_sum, axis=0, keepdims=True) * inv_count  # (1, 1)


# --------------------------------------------------------------------------
# General tiled kernel: per-row-block lane-dense (8,128) partial sums,
# accumulated across lane blocks (grid axis j, 'arbitrary').
# --------------------------------------------------------------------------
def _discounted_l1_partial_kernel(x_ref, y_ref, m_ref, out_ref, *, R, HW, B, L):
    i = pl.program_id(0)
    j = pl.program_id(1)

    x = x_ref[...].astype(jnp.float32)           # (B, L)  cast after load (v5e: no bf16 VPU)
    y = y_ref[...].astype(jnp.float32)
    m = m_ref[...]                               # (1, L) f32, sublane broadcast
    w = jnp.abs(x * m - y * m)                   # (B, L), pure VPU

    # Zero the ragged tails (statically elided when shapes divide evenly);
    # out-of-bounds block regions contain garbage, so mask explicitly.
    if R % B != 0:
        rows = lax.broadcasted_iota(jnp.int32, (B, 1), 0) + i * B
        w = jnp.where(rows < R, w, 0.0)
    if HW % L != 0:
        lanes = lax.broadcasted_iota(jnp.int32, (1, L), 1) + j * L
        w = jnp.where(lanes < HW, w, 0.0)

    # Fold the lane axis down to one 128-lane block: static 128-aligned slices
    # combined pairwise (tree), so the add chain is log2(L/128) deep.  Pure VPU.
    parts = [w[:, c * 128:(c + 1) * 128] for c in range(L // 128)]
    while len(parts) > 1:
        nxt = [parts[a] + parts[a + 1] for a in range(0, len(parts) - 1, 2)]
        if len(parts) % 2:
            nxt.append(parts[-1])
        parts = nxt
    folded = parts[0]                            # (B, 128)

    # Fold rows down to 8 sublanes (layout-preserving reshape + vreg adds).
    partial = jnp.sum(folded.reshape(B // 8, 8, 128), axis=0)   # (8, 128)

    @pl.when(j == 0)
    def _():
        out_ref[...] = jnp.zeros_like(out_ref)
    out_ref[0] = out_ref[0] + partial


_TILE_BYTES = 4 << 20     # per-input per-step tile target (f32-equivalent working set)
_LANE_CAP = 16 * 1024     # max lanes per block: bounds VMEM & the unrolled lane fold
_VMEM_LIMIT = 48 << 20    # raise v5e's 16 MiB scoped default; < v7x's 64 MiB physical
_FUSED_MAX_BYTES = 1 << 20  # use the fused single-step path only for small problems


def discounted_l1(inp, target, mask):
    """inp, target: (N, C, H, W); mask: (H, W). Returns the scalar mean L1 of masked diff."""
    N, C, H, W = inp.shape
    assert target.shape == inp.shape
    assert mask.shape == (H, W)
    R, HW = N * C, H * W
    count = N * C * H * W

    # Lane-dense views; NO dtype cast and NO padding of the big tensors in the
    # wrapper (each would add a full extra HBM pass on a memory-bound kernel).
    x = inp.reshape(R, HW)
    y = target.reshape(R, HW)
    m = mask.reshape(1, HW).astype(jnp.float32)   # tiny; f32 so kernel math is f32

    # ---- tile sizing --------------------------------------------------------
    L = min(_round_up(HW, 128), _LANE_CAP)                       # lanes / block
    rows_budget = max(8, (_TILE_BYTES // (L * 4)) // 8 * 8)      # f32-equivalent budget
    Rp = _round_up(R, 8)
    B = min(Rp, rows_budget)                                     # rows / block
    if Rp > 8:
        # v7x megacore: give the 'parallel' row axis >= 2 blocks when possible.
        B = min(B, max(8, (Rp // 2) // 8 * 8))

    num_i = _cdiv(R, B)
    num_j = _cdiv(HW, L)

    # ---- fused single-step path (covers the shipped 16x16 case) -------------
    if num_i == 1 and num_j == 1 and R * HW * 4 <= _FUSED_MAX_BYTES:
        kernel = functools.partial(_discounted_l1_fused_kernel,
                                   inv_count=float(1.0 / count))
        out = pl.pallas_call(
            kernel,
            out_shape=jax.ShapeDtypeStruct((1, 1), jnp.float32),
            in_specs=[pl.BlockSpec(memory_space=pltpu.MemorySpace.VMEM)] * 3,
            out_specs=pl.BlockSpec(memory_space=pltpu.MemorySpace.VMEM),
        )(x, y, m)
        return out[0, 0]

    # ---- general tiled path --------------------------------------------------
    kernel = functools.partial(_discounted_l1_partial_kernel, R=R, HW=HW, B=B, L=L)
    partials = pl.pallas_call(
        kernel,
        out_shape=jax.ShapeDtypeStruct((num_i, 8, 128), jnp.float32),
        grid=(num_i, num_j),
        in_specs=[
            pl.BlockSpec((B, L), lambda i, j: (i, j)),
            pl.BlockSpec((B, L), lambda i, j: (i, j)),
            pl.BlockSpec((1, L), lambda i, j: (0, j)),
        ],
        out_specs=pl.BlockSpec((1, 8, 128), lambda i, j: (i, 0, 0)),
        compiler_params=pltpu.CompilerParams(
            dimension_semantics=("parallel", "arbitrary"),
            vmem_limit_bytes=_VMEM_LIMIT),
    )(x, y, m)

    # nn.L1Loss(reduction='mean') divides by the ORIGINAL element count
    # (masked-out tail elements contribute exactly 0 to the sum).
    return jnp.sum(partials) / jnp.float32(count)


if __name__ == "__main__":
    key = jax.random.PRNGKey(0)

    def run_case(N, C, H, W):
        k1, k2 = jax.random.split(jax.random.fold_in(key, N * 1009 + C * 101 + H))
        inp = jax.random.normal(k1, (N, C, H, W), dtype=jnp.float32)
        tgt = jax.random.normal(k2, (N, C, H, W), dtype=jnp.float32)
        mask = spatial_discounting_mask(H, W, 0.9, 1)
        loss = jax.block_until_ready(discounted_l1(inp, tgt, mask))
        ref = jnp.mean(jnp.abs(inp * mask[None, None] - tgt * mask[None, None]))
        assert jnp.allclose(loss, ref, rtol=1e-5, atol=1e-6), (N, C, H, W, loss, ref)
        return loss

    # Module-implied shape (fineSize=40, overlap=2 -> 16x16 mask): fused single-step path.
    run_case(2, 4, 16, 16)
    # Slightly larger batch: exercises the tiled grid path ('parallel' row blocks).
    run_case(4, 6, 16, 16)
    # Ragged shape (R % 8 != 0, HW % 128 != 0): exercises in-kernel tail masks (no padding).
    run_case(3, 5, 9, 9)

    print("KERNEL_OK")
</pallas_src>

<mosaic_0001>
module attributes {stable_mosaic.version = 11 : i64} {
  func.func @_discounted_l1_fused_kernel(%arg0: memref<8x256xf32, #tpu.memory_space<vmem>>, %arg1: memref<8x256xf32, #tpu.memory_space<vmem>>, %arg2: memref<1x256xf32, #tpu.memory_space<vmem>>, %arg3: memref<1x1xf32, #tpu.memory_space<vmem>>) attributes {dimension_semantics = [], scalar_prefetch = 0 : i64, scratch_operands = 0 : i64, tpu.core_type = #tpu.core_type<tc>} {
    %c0 = arith.constant 0 : index
    %c0_0 = arith.constant 0 : index
    %0 = vector.load %arg0[%c0, %c0_0] : memref<8x256xf32, #tpu.memory_space<vmem>>, vector<8x256xf32>
    %c0_1 = arith.constant 0 : index
    %c0_2 = arith.constant 0 : index
    %1 = vector.load %arg1[%c0_1, %c0_2] : memref<8x256xf32, #tpu.memory_space<vmem>>, vector<8x256xf32>
    %c0_3 = arith.constant 0 : index
    %c0_4 = arith.constant 0 : index
    %2 = vector.load %arg2[%c0_3, %c0_4] : memref<1x256xf32, #tpu.memory_space<vmem>>, vector<1x256xf32>
    %3 = vector.broadcast %2 : vector<1x256xf32> to vector<8x256xf32>
    %4 = arith.mulf %0, %3 : vector<8x256xf32>
    %5 = vector.broadcast %2 : vector<1x256xf32> to vector<8x256xf32>
    %6 = arith.mulf %1, %5 : vector<8x256xf32>
    %7 = arith.subf %4, %6 : vector<8x256xf32>
    %8 = math.absf %7 : vector<8x256xf32>
    %cst = arith.constant dense<0.000000e+00> : vector<8xf32>
    %9 = vector.multi_reduction <add>, %8, %cst [1] : vector<8x256xf32> to vector<8xf32>
    %10 = vector.shape_cast %9 : vector<8xf32> to vector<8x1xf32>
    %cst_5 = arith.constant dense<0.000000e+00> : vector<1xf32>
    %11 = vector.multi_reduction <add>, %10, %cst_5 [0] : vector<8x1xf32> to vector<1xf32>
    %12 = vector.shape_cast %11 : vector<1xf32> to vector<1x1xf32>
    %cst_6 = arith.constant 4.8828125E-4 : f32
    %13 = vector.broadcast %cst_6 : f32 to vector<1x1xf32>
    %14 = arith.mulf %12, %13 : vector<1x1xf32>
    %c0_7 = arith.constant 0 : index
    %c0_8 = arith.constant 0 : index
    %15 = vector.load %arg3[%c0_7, %c0_8] : memref<1x1xf32, #tpu.memory_space<vmem>>, vector<1x1xf32>
    tpu.vector_store %arg3[%c0_7, %c0_8], %14 {strides = array<i32>} : memref<1x1xf32, #tpu.memory_space<vmem>>, vector<1x1xf32>,
    return
  }
}

</mosaic_0001>

<llo_original>
// kernel: tpu_custom_call.1
$region0: #{tpu_custom_call.1}
  #allocation0 [shape = 'u32[]', space=smem, size = 0x4, offset = 0x4, fixed_abs, tag = 'smem constant byte address 0x4 - core index']
  #allocation1 [shape = 'u32[144,128]{1,0:T(1,128)}', space=vmem, size = 0x12000, scoped, tag = 'internal scratch']
  %s0 = inlined_call_operand.hbm [shape: f32[8,256], index: 0, kind: input, shape index: {}]
  %s1 = inlined_call_operand.hbm [shape: f32[8,256], index: 1, kind: input, shape index: {}]
  %s2 = inlined_call_operand.vmem [shape: f32[1,256], index: 2, kind: input, shape index: {}]
  %s3 = inlined_call_operand.hbm [shape: f32[1,1], index: 3, kind: output, shape index: {}]
  %s4 = sld [smem:[#allocation0]]
  $region30: #{tpu_custom_call.1} parent=0
    _
  %s6 = ssub.s32 1, %s4
  %s7 = scalar_select 0, %s6, %s4
  $region1: #{tpu_custom_call.1} parent=0
    #allocation2 [shape = 'u8[8192]{0}', space=vmem, size = 0x2000, scoped, tag = 'input window, operand 0, single buffered']
    #allocation3 [shape = 's32[1]{0}', space=sflag, size = 0x4, scoped, tag = 'scoped memory for tpu_custom_call.1']
    #allocation4 [shape = 's32[1]{0}', space=sflag, size = 0x4, scoped, tag = 'scoped memory for tpu_custom_call.1']
    #allocation5 [shape = 'u8[8192]{0}', space=vmem, size = 0x2000, scoped, tag = 'input window, operand 1, single buffered']
    #allocation6 [shape = 's32[1]{0}', space=sflag, size = 0x4, scoped, tag = 'scoped memory for tpu_custom_call.1']
    #allocation7 [shape = 'u8[512]{0}', space=vmem, size = 0x400, scoped, tag = 'output window, operand 0, single buffered']
    %8 = vsyncpa [#allocation3], 0
    %9 = vsyncpa [#allocation6], 0
    %10 = vsyncpa [#allocation4], 0
    // Predicated region
    $region2: #{tpu_custom_call.1} parent=1 // pred_check
      _
    $region3: #{tpu_custom_call.1} parent=1 // pred_check_branch
      %12 = sbr.rel (0) target = $region5
    $region4: #{tpu_custom_call.1} parent=1 // pred_region
      %s14 = ssub.s32 256, 256
      %15 = vsyncadd [#allocation3], %s14
      %s17 = sshll.u32 [#allocation2], 4
      %s18 = int_to_ptr.vmem [resolvable:$true] %s17
      %20 = dma.hbm_to_vmem [thread:$0]  %s0, 256, %s18, [#allocation3]
    $region5: #{tpu_custom_call.1} parent=1 // pred_fallthru
      _
    // Predicated region
    $region6: #{tpu_custom_call.1} parent=1 // pred_check
      _
    $region7: #{tpu_custom_call.1} parent=1 // pred_check_branch
      %22 = sbr.rel (0) target = $region9
    $region8: #{tpu_custom_call.1} parent=1 // pred_region
      %s24 = ssub.s32 256, 256
      %25 = vsyncadd [#allocation6], %s24
      %s27 = sshll.u32 [#allocation5], 4
      %s28 = int_to_ptr.vmem [resolvable:$true] %s27
      %30 = dma.hbm_to_vmem [thread:$0]  %s1, 256, %s28, [#allocation6]
    $region9: #{tpu_custom_call.1} parent=1 // pred_fallthru
      _
    // Predicated region
    $region10: #{tpu_custom_call.1} parent=1 // pred_check
      _
    $region11: #{tpu_custom_call.1} parent=1 // pred_check_branch
      %32 = sbr.rel (0) target = $region13
    $region12: #{tpu_custom_call.1} parent=1 // pred_region
      _
    $region13: #{tpu_custom_call.1} parent=1 // pred_fallthru
      _
    // Predicated region
    $region14: #{tpu_custom_call.1} parent=1 // pred_check
      _
    $region15: #{tpu_custom_call.1} parent=1 // pred_check_branch
      %34 = sbr.rel (0) target = $region17
    $region16: #{tpu_custom_call.1} parent=1 // pred_region
      %35 = dma.done [#allocation3], 256
    $region17: #{tpu_custom_call.1} parent=1 // pred_fallthru
      _
    // Predicated region
    $region18: #{tpu_custom_call.1} parent=1 // pred_check
      _
    $region19: #{tpu_custom_call.1} parent=1 // pred_check_branch
      %37 = sbr.rel (0) target = $region21
    $region20: #{tpu_custom_call.1} parent=1 // pred_region
      %38 = dma.done [#allocation6], 256
    $region21: #{tpu_custom_call.1} parent=1 // pred_fallthru
      _
    %v39 = vld [vmem:[#allocation2] sm:$0xff]
    %v40 = vld [vmem:[#allocation2 + $0x8] sm:$0xff]
    %v41 = vld [vmem:[#allocation5] sm:$0xff]
    %v42 = vld [vmem:[#allocation5 + $0x8] sm:$0xff]
    %v43 = vld [vmem:[%s2] sm:$0x3]
    %v45 = vlaneseq
    %v46 = vshrl.u32 %v45, 7
    %v47 = vsub.s32 0, %v46
    %v48 = vrot.slane %v43, %v47
    %v49 = vlaneseq
    %v50 = vshrl.u32 %v49, 7
    %v51 = vsub.s32 1, %v50
    %v52 = vrot.slane %v43, %v51
    %v55 = vmul.f32 %v39, %v48
    %v56 = vmul.f32 %v40, %v52
    %v57 = vmul.f32 %v41, %v48
    %v58 = vmul.f32 %v42, %v52
    %v59 = vsub.f32 %v55, %v57
    %v60 = vsub.f32 %v56, %v58
    %v61 = vand.u32 2147483647, %v59
    %v62 = vand.u32 2147483647, %v60
    %v63 = vadd.f32 %v61, %v62
    %64 = vadd.xlane.f32.xlu0 %v63
    %v65 = vpop.xlane.xlu0 %64
    %v66 = vrot.slane %v65, 4
    %v67 = vadd.f32 %v65, %v66
    %v68 = vrot.slane %v67, 2
    %v69 = vadd.f32 %v67, %v68
    %v70 = vrot.slane %v69, 1
    %v71 = vadd.f32 %v69, %v70
    %v72 = vmul.f32 %v71, 0.00048828125
    %vm73 = vcmask 0
    %74 = vst.msk [vmem:[#allocation7] sm:$0x1] %vm73, %v72
    // Predicated region
    $region22: #{tpu_custom_call.1} parent=1 // pred_check
      _
    $region23: #{tpu_custom_call.1} parent=1 // pred_check_branch
      %76 = sbr.rel (0) target = $region25
    $region24: #{tpu_custom_call.1} parent=1 // pred_region
      %s78 = ssub.s32 16, 16
      %79 = vsyncadd [#allocation4], %s78
      %s81 = sshll.u32 [#allocation7], 4
      %s82 = int_to_ptr.vmem [resolvable:$true] %s81
      %84 = dma.vmem_to_hbm [thread:$0]  %s82, 16, %s3, [#allocation4]
    $region25: #{tpu_custom_call.1} parent=1 // pred_fallthru
      _
    // Predicated region
    $region26: #{tpu_custom_call.1} parent=1 // pred_check
      _
    $region27: #{tpu_custom_call.1} parent=1 // pred_check_branch
      %86 = sbr.rel (0) target = $region29
    $region28: #{tpu_custom_call.1} parent=1 // pred_region
      %87 = dma.done [#allocation4], 16
    $region29: #{tpu_custom_call.1} parent=1 // pred_fallthru
      _
    %88 = vsyncpa [#allocation3], 1
    %89 = vsyncpa [#allocation6], 1
    %90 = vsyncpa [#allocation4], 1

</llo_original>
